<compile_context>
chip_gen: v6e
topology: v6e:2x2x1
jax: 0.10.0
libtpu: 0.0.40
codegen_flags: <defaults>
</compile_context>

<pallas_src>
import functools

import jax
import jax.numpy as jnp
from jax.experimental import pallas as pl
from jax.experimental.pallas import tpu as pltpu


LANE = 128
SUBLANE = 8
_V_TILE = 128                        # one-hot vocab tile: counts stay in vregs
_GATHER_ROWS = 8                     # gather path: batch rows per grid step
_GATHER_MAX_TABLE_BYTES = 16 << 20   # both padded tables must fit well inside VMEM
_ONEHOT_MAX_VOCAB = 2048             # above this the O(B*S*V) count build loses to gather
_ONEHOT_MAX_SEQ = 256                # static-unroll bound for the one-hot S loop


def _round_up(x, m):
    return (x + m - 1) // m * m


# ----------------------------------------------------------------------------
# Table preparation (hoisted out of the per-call path -- do this once at init).
# ----------------------------------------------------------------------------
def prepare_tables(emb_token, emb_lemma, table_dtype=None):
    """Pad (+ optionally cast) the embedding tables once.

    Vocab dims are padded to a multiple of 128 with at least one all-zero row
    (row index V is the gather target for masked/padding positions); embedding
    dims are padded to 128 lanes for unmasked, lane-dense stores.

    table_dtype=jnp.bfloat16 halves table DMA and uses the native bf16 MXU path
    on v6e/v7x; one-hot counts cast to bf16 are exact only for S <= 256.
    """
    if table_dtype is not None:
        emb_token = emb_token.astype(table_dtype)
        emb_lemma = emb_lemma.astype(table_dtype)
    V_tok, D_tok = emb_token.shape
    V_lem, D_lem = emb_lemma.shape
    vt_p, dt_p = _round_up(V_tok + 1, LANE), _round_up(D_tok, LANE)
    vl_p, dl_p = _round_up(V_lem + 1, LANE), _round_up(D_lem, LANE)
    e_tok_p = jnp.zeros((vt_p, dt_p), emb_token.dtype).at[:V_tok, :D_tok].set(emb_token)
    e_lem_p = jnp.zeros((vl_p, dl_p), emb_lemma.dtype).at[:V_lem, :D_lem].set(emb_lemma)
    meta = dict(V_tok=V_tok, D_tok=D_tok, V_lem=V_lem, D_lem=D_lem)
    return e_tok_p, e_lem_p, meta


def _premask_ids(token_ids, lemma_ids, V_tok, V_lem, b_pad, masked_tok, masked_lem):
    """Zero-pad the batch, clamp ids like jnp.take, and fold the text-field mask
    into the ids themselves (masked positions -> sentinel), so the kernels need
    no per-position select/broadcast of a mask (review item #3)."""
    B, S = token_ids.shape
    tok = jnp.zeros((b_pad, S), jnp.int32).at[:B].set(token_ids.astype(jnp.int32))
    lem = jnp.zeros((b_pad, S), jnp.int32).at[:B].set(lemma_ids.astype(jnp.int32))
    mask = tok != 0                                  # get_text_field_mask: pad index 0
    tok_m = jnp.where(mask, jnp.clip(tok, 0, V_tok - 1), masked_tok)
    lem_m = jnp.where(mask, jnp.clip(lem, 0, V_lem - 1), masked_lem)
    return tok_m, lem_m


# ----------------------------------------------------------------------------
# Path A: one-hot counts + MXU matmul (small vocab, or V*D >> VMEM fallback).
# ----------------------------------------------------------------------------
def _onehot_kernel(tok_ref, lem_ref, e_tok_ref, e_lem_ref,
                   out_lem_ref, out_tok_ref, acc_lem, acc_tok):
    vi = pl.program_id(1)

    @pl.when(vi == 0)
    def _init():
        acc_lem[...] = jnp.zeros_like(acc_lem)
        acc_tok[...] = jnp.zeros_like(acc_tok)

    tok = tok_ref[...]                        # [Bt, S] int32, pre-masked (-1 at pads)
    lem = lem_ref[...]
    b_tile, seq = tok.shape
    v_tile = e_tok_ref.shape[0]               # == 128

    # Global vocab range covered by this grid step (the lemma table block may be
    # clamped to its last block when its vocab is smaller -- its counts are then
    # identically zero, so the matmul contribution is zero regardless).
    v_base = vi * v_tile
    vocab_iota = jax.lax.broadcasted_iota(jnp.int32, (b_tile, v_tile), 1) + v_base

    # Register-resident count accumulators: [<=128, 128] f32 -> <=16 vregs each,
    # no spill traffic in the per-position loop.  Masked ids are -1 and can never
    # match vocab_iota >= 0, so the body is compare + convert + add only.
    counts_t = jnp.zeros((b_tile, v_tile), jnp.float32)
    counts_l = jnp.zeros((b_tile, v_tile), jnp.float32)
    for s in range(seq):                      # static loop; this path is gated to S<=256
        counts_t = counts_t + (tok[:, s:s + 1] == vocab_iota).astype(jnp.float32)
        counts_l = counts_l + (lem[:, s:s + 1] == vocab_iota).astype(jnp.float32)

    # Embedding lookup + masked sequence sum fused into one MXU matmul per table,
    # accumulated over vocab tiles in f32.  Counts <= S are exact when cast to
    # bf16 tables for S <= 256.
    acc_lem[...] += jnp.dot(counts_l.astype(e_lem_ref.dtype), e_lem_ref[...],
                            preferred_element_type=jnp.float32)
    acc_tok[...] += jnp.dot(counts_t.astype(e_tok_ref.dtype), e_tok_ref[...],
                            preferred_element_type=jnp.float32)

    @pl.when(vi == pl.num_programs(1) - 1)
    def _store():
        # Lane-dense, full-tile, unmasked stores (D padded to multiples of 128).
        out_lem_ref[...] = acc_lem[...].astype(out_lem_ref.dtype)
        out_tok_ref[...] = acc_tok[...].astype(out_tok_ref.dtype)


def _forward_onehot(tok_m, lem_m, e_tok_p, e_lem_p, b_tile):
    b_pad, S = tok_m.shape
    vt_p, dt_p = e_tok_p.shape
    vl_p, dl_p = e_lem_p.shape
    itemsize = e_tok_p.dtype.itemsize

    n_b = b_pad // b_tile
    n_v_tok = vt_p // _V_TILE
    n_v_lem = vl_p // _V_TILE
    n_v = max(n_v_tok, n_v_lem)               # shared vocab grid axis; smaller table clamps

    grid_spec = pltpu.PrefetchScalarGridSpec(
        num_scalar_prefetch=0,
        grid=(n_b, n_v),
        in_specs=[
            pl.BlockSpec((b_tile, S), lambda bi, vi: (bi, 0)),        # token ids
            pl.BlockSpec((b_tile, S), lambda bi, vi: (bi, 0)),        # lemma ids
            pl.BlockSpec((_V_TILE, dt_p),
                         lambda bi, vi: (jnp.minimum(vi, n_v_tok - 1), 0)),
            pl.BlockSpec((_V_TILE, dl_p),
                         lambda bi, vi: (jnp.minimum(vi, n_v_lem - 1), 0)),
        ],
        out_specs=[
            pl.BlockSpec((b_tile, dl_p), lambda bi, vi: (bi, 0)),
            pl.BlockSpec((b_tile, dt_p), lambda bi, vi: (bi, 0)),
        ],
        scratch_shapes=[
            pltpu.VMEM((b_tile, dl_p), jnp.float32),
            pltpu.VMEM((b_tile, dt_p), jnp.float32),
        ],
    )

    est = (2 * _V_TILE * (dt_p + dl_p) * itemsize   # table tiles (double buffered)
           + 2 * 2 * b_tile * S * 4                 # id tiles (double buffered)
           + 2 * b_tile * (dl_p + dt_p) * 4         # output tiles (double buffered)
           + b_tile * (dl_p + dt_p) * 4             # f32 accumulators
           + 2 * b_tile * _V_TILE * 4)              # live count tiles
    vmem_limit = int(min(max(2 * est + (4 << 20), 32 << 20), 48 << 20))

    v_total = n_v * _V_TILE
    cost = pl.CostEstimate(
        flops=int(2 * b_pad * v_total * (dl_p + dt_p)     # MXU matmuls
                  + 8 * b_pad * S * v_total),             # VPU count build (review item)
        transcendentals=0,
        bytes_accessed=int(n_b * (e_tok_p.size + e_lem_p.size) * itemsize
                           + (tok_m.size + lem_m.size) * 4
                           + b_pad * (dl_p + dt_p) * 4),
    )

    return pl.pallas_call(
        _onehot_kernel,
        out_shape=(jax.ShapeDtypeStruct((b_pad, dl_p), jnp.float32),
                   jax.ShapeDtypeStruct((b_pad, dt_p), jnp.float32)),
        grid_spec=grid_spec,
        compiler_params=pltpu.CompilerParams(
            dimension_semantics=("parallel", "arbitrary"),
            vmem_limit_bytes=vmem_limit),
        cost_estimate=cost,
    )(tok_m, lem_m, e_tok_p, e_lem_p)


# ----------------------------------------------------------------------------
# Path B: VMEM-resident tables + SMEM ids + per-row dynamic gather (realistic V).
# ----------------------------------------------------------------------------
def _gather_kernel(tok_ref, lem_ref,          # scalar prefetch -> SMEM, [B_pad, S] int32
                   e_tok_ref, e_lem_ref,      # full padded tables, VMEM resident
                   out_lem_ref, out_tok_ref,  # [ROWS, D_pad] blocks
                   *, rows, seq, unroll):
    b0 = pl.program_id(0) * rows
    d_lem = out_lem_ref.shape[-1]
    d_tok = out_tok_ref.shape[-1]

    for r in range(rows):                     # static, rows == 8
        def body(s, carry):
            acc_l, acc_t = carry
            # Masked / padding positions were remapped in the wrapper to a
            # guaranteed all-zero table row, so no mask multiply is needed.
            l_id = lem_ref[b0 + r, s]
            t_id = tok_ref[b0 + r, s]
            acc_l = acc_l + e_lem_ref[pl.ds(l_id, 1), :].astype(jnp.float32)
            acc_t = acc_t + e_tok_ref[pl.ds(t_id, 1), :].astype(jnp.float32)
            return acc_l, acc_t

        acc_l, acc_t = jax.lax.fori_loop(
            0, seq, body,
            (jnp.zeros((1, d_lem), jnp.float32),
             jnp.zeros((1, d_tok), jnp.float32)),
            unroll=unroll)
        out_lem_ref[pl.ds(r, 1), :] = acc_l
        out_tok_ref[pl.ds(r, 1), :] = acc_t


def _forward_gather(tok_g, lem_g, e_tok_p, e_lem_p):
    b_pad, S = tok_g.shape
    vt_p, dt_p = e_tok_p.shape
    vl_p, dl_p = e_lem_p.shape
    itemsize = e_tok_p.dtype.itemsize
    n_steps = b_pad // _GATHER_ROWS

    grid_spec = pltpu.PrefetchScalarGridSpec(
        num_scalar_prefetch=2,                 # token / lemma id matrices -> SMEM
        grid=(n_steps,),
        in_specs=[
            pl.BlockSpec((vt_p, dt_p), lambda b, tok, lem: (0, 0)),   # fetched once
            pl.BlockSpec((vl_p, dl_p), lambda b, tok, lem: (0, 0)),   # fetched once
        ],
        out_specs=[
            pl.BlockSpec((_GATHER_ROWS, dl_p), lambda b, tok, lem: (b, 0)),
            pl.BlockSpec((_GATHER_ROWS, dt_p), lambda b, tok, lem: (b, 0)),
        ],
    )

    tbl_bytes = (e_tok_p.size + e_lem_p.size) * itemsize
    est = 2 * tbl_bytes + 2 * 2 * _GATHER_ROWS * (dl_p + dt_p) * 4
    vmem_limit = int(min(max(est + (8 << 20), 32 << 20), 48 << 20))

    cost = pl.CostEstimate(
        flops=int(2 * b_pad * S * (dl_p + dt_p)),
        transcendentals=0,
        bytes_accessed=int(tbl_bytes + (tok_g.size + lem_g.size) * 4
                           + b_pad * (dl_p + dt_p) * 4),
    )

    return pl.pallas_call(
        functools.partial(_gather_kernel, rows=_GATHER_ROWS, seq=S,
                          unroll=min(8, S)),
        out_shape=(jax.ShapeDtypeStruct((b_pad, dl_p), jnp.float32),
                   jax.ShapeDtypeStruct((b_pad, dt_p), jnp.float32)),
        grid_spec=grid_spec,
        compiler_params=pltpu.CompilerParams(
            dimension_semantics=("parallel",),
            vmem_limit_bytes=vmem_limit),
        cost_estimate=cost,
    )(tok_g, lem_g, e_tok_p, e_lem_p)


# ----------------------------------------------------------------------------
# Public forward.
# ----------------------------------------------------------------------------
def mixed_embedding_encoder(token_ids, lemma_ids, prepared, *, method="auto",
                            b_tile=128):
    """Pallas forward of MixedEmbeddingEncoder (features-only path, eval mode).

    Args:
      token_ids: [B, S] int (0 = padding)
      lemma_ids: [B, S] int (0 = padding, same positions as token_ids)
      prepared:  output of prepare_tables() (pad/cast hoisted out of per-call path)
      method:    "auto" | "onehot" | "gather"
      b_tile:    batch rows per grid step for the one-hot path (capped at 128 so
                 counts stay register-resident, and halved when needed so both
                 v7x TensorCores get at least one batch tile).
    Returns:
      [B, D_lem + D_tok] float32 document vectors (lemma block, token block).
    """
    e_tok_p, e_lem_p, meta = prepared
    B, S = token_ids.shape
    V_tok, D_tok = meta["V_tok"], meta["D_tok"]
    V_lem, D_lem = meta["V_lem"], meta["D_lem"]
    vt_p, _ = e_tok_p.shape
    vl_p, _ = e_lem_p.shape

    if method == "auto":
        tbl_bytes = (e_tok_p.size + e_lem_p.size) * e_tok_p.dtype.itemsize
        small = max(vt_p, vl_p) <= _ONEHOT_MAX_VOCAB and S <= _ONEHOT_MAX_SEQ
        fits_vmem = tbl_bytes <= _GATHER_MAX_TABLE_BYTES
        # Small vocab: one-hot+MXU wins.  Large vocab that fits VMEM: gather wins
        # (count build is O(B*S*V)).  Tables too large for VMEM: fall back to the
        # streaming one-hot path (correct for any V).
        # TODO(synk): HBM-resident double-buffered row-DMA gather for V*D >> VMEM.
        method = "onehot" if (small or not fits_vmem) else "gather"

    # TODO(synk): emb_dropout is identity in eval mode; training-time dropout
    # would use pltpu.prng_seed / pltpu.stateful_bernoulli inside the kernels.
    # TODO(synk): BagOfEmbeddingsEncoder(averaged=True) would divide by the
    # per-row valid-token count here.

    if method == "gather":
        b_pad = _round_up(B, _GATHER_ROWS)
        # Masked positions -> the all-zero row at index V (guaranteed by padding).
        tok_g, lem_g = _premask_ids(token_ids, lemma_ids, V_tok, V_lem, b_pad,
                                    masked_tok=V_tok, masked_lem=V_lem)
        out_lem_p, out_tok_p = _forward_gather(tok_g, lem_g, e_tok_p, e_lem_p)
    elif method == "onehot":
        # Cap b_tile at 128 (register-resident counts) and so that ceil(B/b_tile)
        # >= 2 when possible (v7x megacore occupancy).
        b_cap = _round_up(max(1, -(-B // 2)), SUBLANE)
        b_tile = max(SUBLANE, min(b_tile, 128, b_cap, _round_up(B, SUBLANE)))
        b_pad = _round_up(B, b_tile)
        # Masked positions -> -1, which never matches a vocab lane (>= 0).
        tok_m, lem_m = _premask_ids(token_ids, lemma_ids, V_tok, V_lem, b_pad,
                                    masked_tok=-1, masked_lem=-1)
        out_lem_p, out_tok_p = _forward_onehot(tok_m, lem_m, e_tok_p, e_lem_p, b_tile)
    else:
        raise ValueError(f"unknown method: {method!r}")

    # Concatenation in BasicTextFieldEmbedder sorted-key order: lemma, token.
    return jnp.concatenate(
        [out_lem_p[:B, :D_lem], out_tok_p[:B, :D_tok]], axis=-1)


# ----------------------------------------------------------------------------
# Pure-JAX reference mirroring the PyTorch module (eval mode).
# ----------------------------------------------------------------------------
def _reference(token_ids, lemma_ids, emb_token, emb_lemma):
    mask = (token_ids != 0).astype(jnp.float32)                       # [B, S]
    e_l = jnp.take(emb_lemma, lemma_ids, axis=0, mode="clip")         # [B, S, D_lem]
    e_t = jnp.take(emb_token, token_ids, axis=0, mode="clip")         # [B, S, D_tok]
    embedded = jnp.concatenate([e_l, e_t], axis=-1)                   # lemma, token
    return jnp.sum(embedded * mask[:, :, None], axis=1)               # BoE sum


if __name__ == "__main__":
    B, S = 2, 8
    V_TOK, D_TOK = 200, 32    # pads to 2 vocab tiles (exercises the clamped index_map)
    V_LEM, D_LEM = 40, 16     # pads to 1 vocab tile

    key = jax.random.PRNGKey(0)
    k_tok, k_lem, k_et, k_el = jax.random.split(key, 4)

    # Sequence lengths [8, 5]: positions >= length are padding (id 0).
    lengths = jnp.array([8, 5], dtype=jnp.int32)
    pos = jnp.arange(S, dtype=jnp.int32)[None, :]
    valid = (pos < lengths[:, None]).astype(jnp.int32)

    token_ids = jax.random.randint(k_tok, (B, S), 1, V_TOK, dtype=jnp.int32) * valid
    lemma_ids = jax.random.randint(k_lem, (B, S), 1, V_LEM, dtype=jnp.int32) * valid

    emb_token = jax.random.normal(k_et, (V_TOK, D_TOK), jnp.float32) * 0.1
    emb_lemma = jax.random.normal(k_el, (V_LEM, D_LEM), jnp.float32) * 0.1

    prepared = prepare_tables(emb_token, emb_lemma)   # once, outside the per-call path
    v_ref = _reference(token_ids, lemma_ids, emb_token, emb_lemma)

    for method in ("onehot", "gather", "auto"):
        v = mixed_embedding_encoder(token_ids, lemma_ids, prepared, method=method)
        v = jax.block_until_ready(v)
        assert v.shape == (B, D_LEM + D_TOK), (method, v.shape)
        assert jnp.allclose(v, v_ref, atol=1e-5, rtol=1e-5), f"mismatch ({method})"

    print("KERNEL_OK")
</pallas_src>

<mosaic_0001>
module attributes {stable_mosaic.version = 11 : i64} {
  func.func @_onehot_kernel(%arg0: i32, %arg1: i32, %arg2: memref<8x8xi32, #tpu.memory_space<vmem>>, %arg3: memref<8x8xi32, #tpu.memory_space<vmem>>, %arg4: memref<128x128xf32, #tpu.memory_space<vmem>>, %arg5: memref<128x128xf32, #tpu.memory_space<vmem>>, %arg6: memref<8x128xf32, #tpu.memory_space<vmem>>, %arg7: memref<8x128xf32, #tpu.memory_space<vmem>>, %arg8: memref<8x128xf32, #tpu.memory_space<vmem>>, %arg9: memref<8x128xf32, #tpu.memory_space<vmem>>) attributes {dimension_semantics = [#tpu.dimension_semantics<parallel>, #tpu.dimension_semantics<arbitrary>], iteration_bounds = array<i64: 1, 2>, scalar_prefetch = 0 : i64, scratch_operands = 2 : i64, tpu.core_type = #tpu.core_type<tc>, window_params = [{transform_indices = @transform_0, window_bounds = array<i64: 8, 8>}, {transform_indices = @transform_1, window_bounds = array<i64: 8, 8>}, {transform_indices = @transform_2, window_bounds = array<i64: 128, 128>}, {transform_indices = @transform_3, window_bounds = array<i64: 128, 128>}, {transform_indices = @transform_4, window_bounds = array<i64: 8, 128>}, {transform_indices = @transform_5, window_bounds = array<i64: 8, 128>}]} {
    %c0_i32 = arith.constant 0 : i32
    %0 = arith.cmpi eq, %arg1, %c0_i32 : i32
    %1 = arith.extui %0 : i1 to i32
    %c0_i32_0 = arith.constant 0 : i32
    %2 = arith.cmpi ne, %1, %c0_i32_0 : i32
    scf.if %2 {
      %cst_20 = arith.constant 0.000000e+00 : f32
      %120 = vector.broadcast %cst_20 : f32 to vector<8x128xf32>
      %c0_21 = arith.constant 0 : index
      %c0_22 = arith.constant 0 : index
      %121 = vector.load %arg8[%c0_21, %c0_22] : memref<8x128xf32, #tpu.memory_space<vmem>>, vector<8x128xf32>
      tpu.vector_store %arg8[%c0_21, %c0_22], %120 {strides = array<i32>} : memref<8x128xf32, #tpu.memory_space<vmem>>, vector<8x128xf32>,
      %cst_23 = arith.constant 0.000000e+00 : f32
      %122 = vector.broadcast %cst_23 : f32 to vector<8x128xf32>
      %c0_24 = arith.constant 0 : index
      %c0_25 = arith.constant 0 : index
      %123 = vector.load %arg9[%c0_24, %c0_25] : memref<8x128xf32, #tpu.memory_space<vmem>>, vector<8x128xf32>
      tpu.vector_store %arg9[%c0_24, %c0_25], %122 {strides = array<i32>} : memref<8x128xf32, #tpu.memory_space<vmem>>, vector<8x128xf32>,
    } else {
    }
    %c0 = arith.constant 0 : index
    %c0_1 = arith.constant 0 : index
    %3 = vector.load %arg2[%c0, %c0_1] : memref<8x8xi32, #tpu.memory_space<vmem>>, vector<8x8xi32>
    %c0_2 = arith.constant 0 : index
    %c0_3 = arith.constant 0 : index
    %4 = vector.load %arg3[%c0_2, %c0_3] : memref<8x8xi32, #tpu.memory_space<vmem>>, vector<8x8xi32>
    %c128_i32 = arith.constant 128 : i32
    %5 = arith.muli %arg1, %c128_i32 : i32
    %6 = tpu.iota {dimensions = array<i32: 1>} : vector<8x128xi32>
    %7 = vector.broadcast %5 : i32 to vector<8x128xi32>
    %8 = arith.addi %6, %7 : vector<8x128xi32>
    %cst = arith.constant 0.000000e+00 : f32
    %9 = vector.broadcast %cst : f32 to vector<8x128xf32>
    %cst_4 = arith.constant 0.000000e+00 : f32
    %10 = vector.broadcast %cst_4 : f32 to vector<8x128xf32>
    %11 = vector.extract_strided_slice %3 {offsets = [0, 0], sizes = [8, 1], strides = [1, 1]} : vector<8x8xi32> to vector<8x1xi32>
    %12 = vector.broadcast %11 : vector<8x1xi32> to vector<8x128xi32>
    %13 = arith.cmpi eq, %12, %8 : vector<8x128xi32>
    %14 = arith.extui %13 : vector<8x128xi1> to vector<8x128xi32>
    %15 = arith.sitofp %14 : vector<8x128xi32> to vector<8x128xf32>
    %16 = arith.addf %9, %15 : vector<8x128xf32>
    %17 = vector.extract_strided_slice %4 {offsets = [0, 0], sizes = [8, 1], strides = [1, 1]} : vector<8x8xi32> to vector<8x1xi32>
    %18 = vector.broadcast %17 : vector<8x1xi32> to vector<8x128xi32>
    %19 = arith.cmpi eq, %18, %8 : vector<8x128xi32>
    %20 = arith.extui %19 : vector<8x128xi1> to vector<8x128xi32>
    %21 = arith.sitofp %20 : vector<8x128xi32> to vector<8x128xf32>
    %22 = arith.addf %10, %21 : vector<8x128xf32>
    %23 = vector.extract_strided_slice %3 {offsets = [0, 1], sizes = [8, 1], strides = [1, 1]} : vector<8x8xi32> to vector<8x1xi32>
    %24 = vector.broadcast %23 : vector<8x1xi32> to vector<8x128xi32>
    %25 = arith.cmpi eq, %24, %8 : vector<8x128xi32>
    %26 = arith.extui %25 : vector<8x128xi1> to vector<8x128xi32>
    %27 = arith.sitofp %26 : vector<8x128xi32> to vector<8x128xf32>
    %28 = arith.addf %16, %27 : vector<8x128xf32>
    %29 = vector.extract_strided_slice %4 {offsets = [0, 1], sizes = [8, 1], strides = [1, 1]} : vector<8x8xi32> to vector<8x1xi32>
    %30 = vector.broadcast %29 : vector<8x1xi32> to vector<8x128xi32>
    %31 = arith.cmpi eq, %30, %8 : vector<8x128xi32>
    %32 = arith.extui %31 : vector<8x128xi1> to vector<8x128xi32>
    %33 = arith.sitofp %32 : vector<8x128xi32> to vector<8x128xf32>
    %34 = arith.addf %22, %33 : vector<8x128xf32>
    %35 = vector.extract_strided_slice %3 {offsets = [0, 2], sizes = [8, 1], strides = [1, 1]} : vector<8x8xi32> to vector<8x1xi32>
    %36 = vector.broadcast %35 : vector<8x1xi32> to vector<8x128xi32>
    %37 = arith.cmpi eq, %36, %8 : vector<8x128xi32>
    %38 = arith.extui %37 : vector<8x128xi1> to vector<8x128xi32>
    %39 = arith.sitofp %38 : vector<8x128xi32> to vector<8x128xf32>
    %40 = arith.addf %28, %39 : vector<8x128xf32>
    %41 = vector.extract_strided_slice %4 {offsets = [0, 2], sizes = [8, 1], strides = [1, 1]} : vector<8x8xi32> to vector<8x1xi32>
    %42 = vector.broadcast %41 : vector<8x1xi32> to vector<8x128xi32>
    %43 = arith.cmpi eq, %42, %8 : vector<8x128xi32>
    %44 = arith.extui %43 : vector<8x128xi1> to vector<8x128xi32>
    %45 = arith.sitofp %44 : vector<8x128xi32> to vector<8x128xf32>
    %46 = arith.addf %34, %45 : vector<8x128xf32>
    %47 = vector.extract_strided_slice %3 {offsets = [0, 3], sizes = [8, 1], strides = [1, 1]} : vector<8x8xi32> to vector<8x1xi32>
    %48 = vector.broadcast %47 : vector<8x1xi32> to vector<8x128xi32>
    %49 = arith.cmpi eq, %48, %8 : vector<8x128xi32>
    %50 = arith.extui %49 : vector<8x128xi1> to vector<8x128xi32>
    %51 = arith.sitofp %50 : vector<8x128xi32> to vector<8x128xf32>
    %52 = arith.addf %40, %51 : vector<8x128xf32>
    %53 = vector.extract_strided_slice %4 {offsets = [0, 3], sizes = [8, 1], strides = [1, 1]} : vector<8x8xi32> to vector<8x1xi32>
    %54 = vector.broadcast %53 : vector<8x1xi32> to vector<8x128xi32>
    %55 = arith.cmpi eq, %54, %8 : vector<8x128xi32>
    %56 = arith.extui %55 : vector<8x128xi1> to vector<8x128xi32>
    %57 = arith.sitofp %56 : vector<8x128xi32> to vector<8x128xf32>
    %58 = arith.addf %46, %57 : vector<8x128xf32>
    %59 = vector.extract_strided_slice %3 {offsets = [0, 4], sizes = [8, 1], strides = [1, 1]} : vector<8x8xi32> to vector<8x1xi32>
    %60 = vector.broadcast %59 : vector<8x1xi32> to vector<8x128xi32>
    %61 = arith.cmpi eq, %60, %8 : vector<8x128xi32>
    %62 = arith.extui %61 : vector<8x128xi1> to vector<8x128xi32>
    %63 = arith.sitofp %62 : vector<8x128xi32> to vector<8x128xf32>
    %64 = arith.addf %52, %63 : vector<8x128xf32>
    %65 = vector.extract_strided_slice %4 {offsets = [0, 4], sizes = [8, 1], strides = [1, 1]} : vector<8x8xi32> to vector<8x1xi32>
    %66 = vector.broadcast %65 : vector<8x1xi32> to vector<8x128xi32>
    %67 = arith.cmpi eq, %66, %8 : vector<8x128xi32>
    %68 = arith.extui %67 : vector<8x128xi1> to vector<8x128xi32>
    %69 = arith.sitofp %68 : vector<8x128xi32> to vector<8x128xf32>
    %70 = arith.addf %58, %69 : vector<8x128xf32>
    %71 = vector.extract_strided_slice %3 {offsets = [0, 5], sizes = [8, 1], strides = [1, 1]} : vector<8x8xi32> to vector<8x1xi32>
    %72 = vector.broadcast %71 : vector<8x1xi32> to vector<8x128xi32>
    %73 = arith.cmpi eq, %72, %8 : vector<8x128xi32>
    %74 = arith.extui %73 : vector<8x128xi1> to vector<8x128xi32>
    %75 = arith.sitofp %74 : vector<8x128xi32> to vector<8x128xf32>
    %76 = arith.addf %64, %75 : vector<8x128xf32>
    %77 = vector.extract_strided_slice %4 {offsets = [0, 5], sizes = [8, 1], strides = [1, 1]} : vector<8x8xi32> to vector<8x1xi32>
    %78 = vector.broadcast %77 : vector<8x1xi32> to vector<8x128xi32>
    %79 = arith.cmpi eq, %78, %8 : vector<8x128xi32>
    %80 = arith.extui %79 : vector<8x128xi1> to vector<8x128xi32>
    %81 = arith.sitofp %80 : vector<8x128xi32> to vector<8x128xf32>
    %82 = arith.addf %70, %81 : vector<8x128xf32>
    %83 = vector.extract_strided_slice %3 {offsets = [0, 6], sizes = [8, 1], strides = [1, 1]} : vector<8x8xi32> to vector<8x1xi32>
    %84 = vector.broadcast %83 : vector<8x1xi32> to vector<8x128xi32>
    %85 = arith.cmpi eq, %84, %8 : vector<8x128xi32>
    %86 = arith.extui %85 : vector<8x128xi1> to vector<8x128xi32>
    %87 = arith.sitofp %86 : vector<8x128xi32> to vector<8x128xf32>
    %88 = arith.addf %76, %87 : vector<8x128xf32>
    %89 = vector.extract_strided_slice %4 {offsets = [0, 6], sizes = [8, 1], strides = [1, 1]} : vector<8x8xi32> to vector<8x1xi32>
    %90 = vector.broadcast %89 : vector<8x1xi32> to vector<8x128xi32>
    %91 = arith.cmpi eq, %90, %8 : vector<8x128xi32>
    %92 = arith.extui %91 : vector<8x128xi1> to vector<8x128xi32>
    %93 = arith.sitofp %92 : vector<8x128xi32> to vector<8x128xf32>
    %94 = arith.addf %82, %93 : vector<8x128xf32>
    %95 = vector.extract_strided_slice %3 {offsets = [0, 7], sizes = [8, 1], strides = [1, 1]} : vector<8x8xi32> to vector<8x1xi32>
    %96 = vector.broadcast %95 : vector<8x1xi32> to vector<8x128xi32>
    %97 = arith.cmpi eq, %96, %8 : vector<8x128xi32>
    %98 = arith.extui %97 : vector<8x128xi1> to vector<8x128xi32>
    %99 = arith.sitofp %98 : vector<8x128xi32> to vector<8x128xf32>
    %100 = arith.addf %88, %99 : vector<8x128xf32>
    %101 = vector.extract_strided_slice %4 {offsets = [0, 7], sizes = [8, 1], strides = [1, 1]} : vector<8x8xi32> to vector<8x1xi32>
    %102 = vector.broadcast %101 : vector<8x1xi32> to vector<8x128xi32>
    %103 = arith.cmpi eq, %102, %8 : vector<8x128xi32>
    %104 = arith.extui %103 : vector<8x128xi1> to vector<8x128xi32>
    %105 = arith.sitofp %104 : vector<8x128xi32> to vector<8x128xf32>
    %106 = arith.addf %94, %105 : vector<8x128xf32>
    %c0_5 = arith.constant 0 : index
    %c0_6 = arith.constant 0 : index
    %107 = vector.load %arg8[%c0_5, %c0_6] : memref<8x128xf32, #tpu.memory_space<vmem>>, vector<8x128xf32>
    %c0_7 = arith.constant 0 : index
    %c0_8 = arith.constant 0 : index
    %108 = vector.load %arg5[%c0_7, %c0_8] : memref<128x128xf32, #tpu.memory_space<vmem>>, vector<128x128xf32>
    %cst_9 = arith.constant dense<0.000000e+00> : vector<8x128xf32>
    %109 = tpu.matmul %106, %108, %cst_9 {dimension_numbers = #tpu.dot_dimension_numbers<[1], [0], [0], [1], [0, 0, 1, 1], [], []>} : vector<8x128xf32>, vector<128x128xf32>, vector<8x128xf32> -> vector<8x128xf32>
    %110 = arith.addf %107, %109 : vector<8x128xf32>
    %c0_10 = arith.constant 0 : index
    %c0_11 = arith.constant 0 : index
    %111 = vector.load %arg8[%c0_10, %c0_11] : memref<8x128xf32, #tpu.memory_space<vmem>>, vector<8x128xf32>
    tpu.vector_store %arg8[%c0_10, %c0_11], %110 {strides = array<i32>} : memref<8x128xf32, #tpu.memory_space<vmem>>, vector<8x128xf32>,
    %c0_12 = arith.constant 0 : index
    %c0_13 = arith.constant 0 : index
    %112 = vector.load %arg9[%c0_12, %c0_13] : memref<8x128xf32, #tpu.memory_space<vmem>>, vector<8x128xf32>
    %c0_14 = arith.constant 0 : index
    %c0_15 = arith.constant 0 : index
    %113 = vector.load %arg4[%c0_14, %c0_15] : memref<128x128xf32, #tpu.memory_space<vmem>>, vector<128x128xf32>
    %cst_16 = arith.constant dense<0.000000e+00> : vector<8x128xf32>
    %114 = tpu.matmul %100, %113, %cst_16 {dimension_numbers = #tpu.dot_dimension_numbers<[1], [0], [0], [1], [0, 0, 1, 1], [], []>} : vector<8x128xf32>, vector<128x128xf32>, vector<8x128xf32> -> vector<8x128xf32>
    %115 = arith.addf %112, %114 : vector<8x128xf32>
    %c0_17 = arith.constant 0 : index
    %c0_18 = arith.constant 0 : index
    %116 = vector.load %arg9[%c0_17, %c0_18] : memref<8x128xf32, #tpu.memory_space<vmem>>, vector<8x128xf32>
    tpu.vector_store %arg9[%c0_17, %c0_18], %115 {strides = array<i32>} : memref<8x128xf32, #tpu.memory_space<vmem>>, vector<8x128xf32>,
    %c1_i32 = arith.constant 1 : i32
    %117 = arith.cmpi eq, %arg1, %c1_i32 : i32
    %118 = arith.extui %117 : i1 to i32
    %c0_i32_19 = arith.constant 0 : i32
    %119 = arith.cmpi ne, %118, %c0_i32_19 : i32
    scf.if %119 {
      %c0_20 = arith.constant 0 : index
      %c0_21 = arith.constant 0 : index
      %120 = vector.load %arg8[%c0_20, %c0_21] : memref<8x128xf32, #tpu.memory_space<vmem>>, vector<8x128xf32>
      %c0_22 = arith.constant 0 : index
      %c0_23 = arith.constant 0 : index
      %121 = vector.load %arg6[%c0_22, %c0_23] : memref<8x128xf32, #tpu.memory_space<vmem>>, vector<8x128xf32>
      tpu.vector_store %arg6[%c0_22, %c0_23], %120 {strides = array<i32>} : memref<8x128xf32, #tpu.memory_space<vmem>>, vector<8x128xf32>,
      %c0_24 = arith.constant 0 : index
      %c0_25 = arith.constant 0 : index
      %122 = vector.load %arg9[%c0_24, %c0_25] : memref<8x128xf32, #tpu.memory_space<vmem>>, vector<8x128xf32>
      %c0_26 = arith.constant 0 : index
      %c0_27 = arith.constant 0 : index
      %123 = vector.load %arg7[%c0_26, %c0_27] : memref<8x128xf32, #tpu.memory_space<vmem>>, vector<8x128xf32>
      tpu.vector_store %arg7[%c0_26, %c0_27], %122 {strides = array<i32>} : memref<8x128xf32, #tpu.memory_space<vmem>>, vector<8x128xf32>,
    } else {
    }
    return
  }
  func.func @transform_0(%arg0: i32, %arg1: i32) -> (i32, i32) {
    %c0_i32 = arith.constant 0 : i32
    %c0_i32_0 = arith.constant 0 : i32
    return %arg0, %c0_i32 : i32, i32
  }
  func.func @transform_1(%arg0: i32, %arg1: i32) -> (i32, i32) {
    %c0_i32 = arith.constant 0 : i32
    %c0_i32_0 = arith.constant 0 : i32
    return %arg0, %c0_i32 : i32, i32
  }
  func.func @transform_2(%arg0: i32, %arg1: i32) -> (i32, i32) {
    %c1_i32 = arith.constant 1 : i32
    %0 = arith.minsi %arg1, %c1_i32 : i32
    %c0_i32 = arith.constant 0 : i32
    %c0_i32_0 = arith.constant 0 : i32
    return %0, %c0_i32 : i32, i32
  }
  func.func @transform_3(%arg0: i32, %arg1: i32) -> (i32, i32) {
    %c0_i32 = arith.constant 0 : i32
    %0 = arith.minsi %arg1, %c0_i32 : i32
    %c0_i32_0 = arith.constant 0 : i32
    %c0_i32_1 = arith.constant 0 : i32
    return %0, %c0_i32_0 : i32, i32
  }
  func.func @transform_4(%arg0: i32, %arg1: i32) -> (i32, i32) {
    %c0_i32 = arith.constant 0 : i32
    %c0_i32_0 = arith.constant 0 : i32
    return %arg0, %c0_i32 : i32, i32
  }
  func.func @transform_5(%arg0: i32, %arg1: i32) -> (i32, i32) {
    %c0_i32 = arith.constant 0 : i32
    %c0_i32_0 = arith.constant 0 : i32
    return %arg0, %c0_i32 : i32, i32
  }
}

</mosaic_0001>

<llo_original>
// kernel: tpu_custom_call.1
$region0: #{tpu_custom_call.1}
  #allocation0 [shape = 'u32[]', space=smem, size = 0x4, offset = 0x4, fixed_abs, tag = 'smem constant byte address 0x4 - core index']
  #allocation1 [shape = 'u32[144,128]{1,0:T(1,128)}', space=vmem, size = 0x12000, scoped, tag = 'internal scratch']
  #allocation2 [shape = 'f32[8,128]{1,0:T(8,128)}', space=vmem, size = 0x1000, scoped, tag = 'scratch operand']
  #allocation3 [shape = 'f32[8,128]{1,0:T(8,128)}', space=vmem, size = 0x1000, scoped, tag = 'scratch operand']
  %s0 = inlined_call_operand.hbm [shape: s32[8,8], index: 0, kind: input, shape index: {}]
  %s1 = inlined_call_operand.hbm [shape: s32[8,8], index: 1, kind: input, shape index: {}]
  %s2 = inlined_call_operand.hbm [shape: f32[256,128], index: 2, kind: input, shape index: {}]
  %s3 = inlined_call_operand.hbm [shape: f32[128,128], index: 3, kind: input, shape index: {}]
  %s4 = inlined_call_operand.hbm [shape: f32[8,128], index: 4, kind: output, shape index: {0}]
  %s5 = inlined_call_operand.hbm [shape: f32[8,128], index: 5, kind: output, shape index: {1}]
  %6 = xla_tuple %s4, %s5
  %s7 = sld [smem:[#allocation0]]
  $region81: #{tpu_custom_call.1} parent=0
    _
  %s9 = ssub.s32 1, %s7
  %s10 = scalar_select 0, %s9, %s7
  $region1: #{tpu_custom_call.1} parent=0
    #allocation4 [shape = 'u8[4096]{0}', space=vmem, size = 0x1000, scoped, tag = 'input window, operand 0, single buffered']
    #allocation5 [shape = 's32[2]{0}', space=sflag, size = 0x8, scoped, tag = 'scoped memory for tpu_custom_call.1']
    #allocation6 [shape = 's32[2]{0}', space=sflag, size = 0x8, scoped, tag = 'scoped memory for tpu_custom_call.1']
    #allocation7 [shape = 'u8[4096]{0}', space=vmem, size = 0x1000, scoped, tag = 'input window, operand 1, single buffered']
    #allocation8 [shape = 's32[1]{0}', space=sflag, size = 0x4, scoped, tag = 'scoped memory for tpu_custom_call.1']
    #allocation9 [shape = 'u8[131072]{0}', space=vmem, size = 0x20000, scoped, tag = 'input window, operand 2']
    #allocation10 [shape = 'u8[131072]{0}', space=vmem, size = 0x20000, scoped, tag = 'input window, operand 3']
    #allocation11 [shape = 'u8[4096]{0}', space=vmem, size = 0x1000, scoped, tag = 'output window, operand 0, single buffered']
    #allocation12 [shape = 'u8[4096]{0}', space=vmem, size = 0x1000, scoped, tag = 'output window, operand 1, single buffered']
    #allocation13 [shape = 's32[1]{0}', space=sflag, size = 0x4, scoped, tag = 'scoped memory for tpu_custom_call.1']
    %11 = vsyncpa [#allocation5], 0
    %12 = vsyncpa [#allocation8], 0
    %13 = vsyncpa [#allocation6], 0
    %14 = vsyncpa [#allocation13], 0
    loop: start=0, step=1, limit=4
    $region2: #{tpu_custom_call.1} parent=1 // loop_pre_header
      _
    $region3: #{tpu_custom_call.1} parent=1 // loop_header
      %s16 = sphi 0, %s20
      %p17 = scmp.ge.s32.totalorder %s16, 4
      %s23 = sphi 0, %s35
      %s24 = sphi 0, %s31
      %s25 = sphi 0, %s23
      %s26 = sphi 0, %s24
      %s27 = sphi 0, %s25
      %s28 = sphi 0, %s26
      %s38 = sphi 0, %s40
      %s41 = sphi 0, %s38
      %s42 = sphi 0, %s41
      %s58 = sphi 0, %s42
      %s64 = sphi 0, %s66
      %s67 = sphi 0, %s64
      %s68 = sphi 0, %s67
      %s84 = sphi 0, %s68
      %s94 = sphi 0, %s96
      %s97 = sphi 0, %s94
      %s98 = sphi 0, %s97
      %s114 = sphi 0, %s98
      %s124 = sphi 0, %s126
      %s127 = sphi 0, %s124
      %s128 = sphi 0, %s127
      %s144 = sphi 0, %s128
      %s150 = sphi 0, %s152
      %s153 = sphi 0, %s150
      %s154 = sphi 0, %s153
      %s170 = sphi 0, %s154
      %s176 = sphi 0, %s178
      %s179 = sphi 0, %s176
      %s180 = sphi 0, %s179
      %s196 = sphi 0, %s180
    $region4: #{tpu_custom_call.1} parent=1 // loop_header_branch
      %19 = sbr.rel (%p17) target = $region8
    $region5: #{tpu_custom_call.1} parent=1 // loop_body
      %s21 = ssub.s32 %s16, 1
      %s22 = ssub.s32 %s16, 2
      %s29 = sadd.s32 1, %s24
      %p30 = scmp.ge.s32.totalorder %s29, 2
      %s31 = scalar_select %p30, 0, %s29
      %s32 = sadd.s32 1, %s23
      %s33 = scalar_select %p30, %s32, %s23
      %p34 = scmp.ge.s32.totalorder %s33, 1
      %s35 = scalar_select %p34, 0, %s33
      %s36 = ssub.s32 %s23, %s35
      %p37 = scmp.eq.s32.totalorder %s36, 0
      %s39 = sadd.s32 %s38, 1
      %s40 = scalar_select %p37, %s38, %s39
      %p43 = pneg %p37
      %p44 = scmp.eq.s32.totalorder %s16, 1
      %p45 = por %p43, %p44
      %p46 = scmp.ne.s32.totalorder %s38, %s41
      %p47 = scmp.eq.s32.totalorder %s16, 0
      %p48 = por %p46, %p47
      %p49 = scmp.ne.s32.totalorder %s38, %s41
      %p50 = scmp.eq.s32.totalorder %s21, 1
      %p51 = por %p49, %p50
      %p52 = scmp.ne.s32.totalorder %s41, %s42
      %p53 = scmp.eq.s32.totalorder %s21, 0
      %p54 = por %p52, %p53
      %p55 = scmp.ne.s32.totalorder %s41, %s42
      %p56 = scmp.eq.s32.totalorder %s22, 1
      %p57 = por %p55, %p56
      %p59 = scmp.ne.s32.totalorder %s42, %s58
      %p60 = scmp.eq.s32.totalorder %s22, 0
      %p61 = por %p59, %p60
      %s62 = ssub.s32 %s23, %s35
      %p63 = scmp.eq.s32.totalorder %s62, 0
      %s65 = sadd.s32 %s64, 1
      %s66 = scalar_select %p63, %s64, %s65
      %p69 = pneg %p63
      %p70 = scmp.eq.s32.totalorder %s16, 1
      %p71 = por %p69, %p70
      %p72 = scmp.ne.s32.totalorder %s64, %s67
      %p73 = scmp.eq.s32.totalorder %s16, 0
      %p74 = por %p72, %p73
      %p75 = scmp.ne.s32.totalorder %s64, %s67
      %p76 = scmp.eq.s32.totalorder %s21, 1
      %p77 = por %p75, %p76
      %p78 = scmp.ne.s32.totalorder %s67, %s68
      %p79 = scmp.eq.s32.totalorder %s21, 0
      %p80 = por %p78, %p79
      %p81 = scmp.ne.s32.totalorder %s67, %s68
      %p82 = scmp.eq.s32.totalorder %s22, 1
      %p83 = por %p81, %p82
      %p85 = scmp.ne.s32.totalorder %s68, %s84
      %p86 = scmp.eq.s32.totalorder %s22, 0
      %p87 = por %p85, %p86
      %p88 = scmp.lt.s32.totalorder %s24, 1
      %s89 = scalar_select %p88, %s24, 1
      %p90 = scmp.lt.s32.totalorder %s31, 1
      %s91 = scalar_select %p90, %s31, 1
      %s92 = ssub.s32 %s89, %s91
      %p93 = scmp.eq.s32.totalorder %s92, 0
      %s95 = sadd.s32 %s94, 1
      %s96 = scalar_select %p93, %s94, %s95
      %p99 = pneg %p93
      %p100 = scmp.eq.s32.totalorder %s16, 1
      %p101 = por %p99, %p100
      %p102 = scmp.ne.s32.totalorder %s94, %s97
      %p103 = scmp.eq.s32.totalorder %s16, 0
      %p104 = por %p102, %p103
      %p105 = scmp.ne.s32.totalorder %s94, %s97
      %p106 = scmp.eq.s32.totalorder %s21, 1
      %p107 = por %p105, %p106
      %p108 = scmp.ne.s32.totalorder %s97, %s98
      %p109 = scmp.eq.s32.totalorder %s21, 0
      %p110 = por %p108, %p109
      %p111 = scmp.ne.s32.totalorder %s97, %s98
      %p112 = scmp.eq.s32.totalorder %s22, 1
      %p113 = por %p111, %p112
      %p115 = scmp.ne.s32.totalorder %s98, %s114
      %p116 = scmp.eq.s32.totalorder %s22, 0
      %p117 = por %p115, %p116
      %p118 = scmp.lt.s32.totalorder %s24, 0
      %s119 = scalar_select %p118, %s24, 0
      %p120 = scmp.lt.s32.totalorder %s31, 0
      %s121 = scalar_select %p120, %s31, 0
      %s122 = ssub.s32 %s119, %s121
      %p123 = scmp.eq.s32.totalorder %s122, 0
      %s125 = sadd.s32 %s124, 1
      %s126 = scalar_select %p123, %s124, %s125
      %p129 = pneg %p123
      %p130 = scmp.eq.s32.totalorder %s16, 1
      %p131 = por %p129, %p130
      %p132 = scmp.ne.s32.totalorder %s124, %s127
      %p133 = scmp.eq.s32.totalorder %s16, 0
      %p134 = por %p132, %p133
      %p135 = scmp.ne.s32.totalorder %s124, %s127
      %p136 = scmp.eq.s32.totalorder %s21, 1
      %p137 = por %p135, %p136
      %p138 = scmp.ne.s32.totalorder %s127, %s128
      %p139 = scmp.eq.s32.totalorder %s21, 0
      %p140 = por %p138, %p139
      %p141 = scmp.ne.s32.totalorder %s127, %s128
      %p142 = scmp.eq.s32.totalorder %s22, 1
      %p143 = por %p141, %p142
      %p145 = scmp.ne.s32.totalorder %s128, %s144
      %p146 = scmp.eq.s32.totalorder %s22, 0
      %p147 = por %p145, %p146
      %s148 = ssub.s32 %s23, %s35
      %p149 = scmp.eq.s32.totalorder %s148, 0
      %s151 = sadd.s32 %s150, 1
      %s152 = scalar_select %p149, %s150, %s151
      %p155 = pneg %p149
      %p156 = scmp.eq.s32.totalorder %s16, 1
      %p157 = por %p155, %p156
      %p158 = scmp.ne.s32.totalorder %s150, %s153
      %p159 = scmp.eq.s32.totalorder %s16, 0
      %p160 = por %p158, %p159
      %p161 = scmp.ne.s32.totalorder %s150, %s153
      %p162 = scmp.eq.s32.totalorder %s21, 1
      %p163 = por %p161, %p162
      %p164 = scmp.ne.s32.totalorder %s153, %s154
      %p165 = scmp.eq.s32.totalorder %s21, 0
      %p166 = por %p164, %p165
      %p167 = scmp.ne.s32.totalorder %s153, %s154
      %p168 = scmp.eq.s32.totalorder %s22, 1
      %p169 = por %p167, %p168
      %p171 = scmp.ne.s32.totalorder %s154, %s170
      %p172 = scmp.eq.s32.totalorder %s22, 0
      %p173 = por %p171, %p172
      %s174 = ssub.s32 %s23, %s35
      %p175 = scmp.eq.s32.totalorder %s174, 0
      %s177 = sadd.s32 %s176, 1
      %s178 = scalar_select %p175, %s176, %s177
      %p181 = pneg %p175
      %p182 = scmp.eq.s32.totalorder %s16, 1
      %p183 = por %p181, %p182
      %p184 = scmp.ne.s32.totalorder %s176, %s179
      %p185 = scmp.eq.s32.totalorder %s16, 0
      %p186 = por %p184, %p185
      %p187 = scmp.ne.s32.totalorder %s176, %s179
      %p188 = scmp.eq.s32.totalorder %s21, 1
      %p189 = por %p187, %p188
      %p190 = scmp.ne.s32.totalorder %s179, %s180
      %p191 = scmp.eq.s32.totalorder %s21, 0
      %p192 = por %p190, %p191
      %p193 = scmp.ne.s32.totalorder %s179, %s180
      %p194 = scmp.eq.s32.totalorder %s22, 1
      %p195 = por %p193, %p194
      %p197 = scmp.ne.s32.totalorder %s180, %s196
      %p198 = scmp.eq.s32.totalorder %s22, 0
      %p199 = por %p197, %p198
      %p200 = scmp.le.s32.totalorder 1, %s16
      %p201 = scmp.lt.s32.totalorder %s16, 3
      %p202 = pnand %p200, %p201
      %p203 = pneg %p202
      // Predicated region
      $region9: #{tpu_custom_call.1} parent=5 // pred_check
        _
      $region10: #{tpu_custom_call.1} parent=5 // pred_check_branch
        %205 = sbr.rel (%p202) target = $region12
      $region11: #{tpu_custom_call.1} parent=5 // pred_region
        %s206 = ssub.s32 %s16, 1
        // Predicated region
        $region13: #{tpu_custom_call.1} parent=11 // pred_check
          %p207 = pneg %p54
        $region14: #{tpu_custom_call.1} parent=11 // pred_check_branch
          %209 = sbr.rel (%p207) target = $region16
        $region15: #{tpu_custom_call.1} parent=11 // pred_region
          %s211 = ssub.s32 128, 128
          %212 = vsyncadd [#allocation5], %s211
          %s213 = smul.addr %s25, 128
          %s214 = scalar_lea.hbm %s0, %s213
          %s216 = sshll.u32 [#allocation4], 4
          %s217 = int_to_ptr.vmem [resolvable:$true] %s216
          %219 = dma.hbm_to_vmem [thread:$0]  %s214, 128, %s217, [#allocation5]
        $region16: #{tpu_custom_call.1} parent=11 // pred_fallthru
          _
        // Predicated region
        $region17: #{tpu_custom_call.1} parent=11 // pred_check
          %p220 = pneg %p80
        $region18: #{tpu_custom_call.1} parent=11 // pred_check_branch
          %222 = sbr.rel (%p220) target = $region20
        $region19: #{tpu_custom_call.1} parent=11 // pred_region
          %s224 = ssub.s32 128, 128
          %225 = vsyncadd [#allocation8], %s224
          %s226 = smul.addr %s25, 128
          %s227 = scalar_lea.hbm %s1, %s226
          %s229 = sshll.u32 [#allocation7], 4
          %s230 = int_to_ptr.vmem [resolvable:$true] %s229
          %232 = dma.hbm_to_vmem [thread:$0]  %s227, 128, %s230, [#allocation8]
        $region20: #{tpu_custom_call.1} parent=11 // pred_fallthru
          _
      $region12: #{tpu_custom_call.1} parent=5 // pred_fallthru
        _
      %p233 = scmp.lt.s32.totalorder %s16, 2
      // Predicated region
      $region21: #{tpu_custom_call.1} parent=5 // pred_check
        %p234 = pneg %p233
      $region22: #{tpu_custom_call.1} parent=5 // pred_check_branch
        %236 = sbr.rel (%p234) target = $region24
      $region23: #{tpu_custom_call.1} parent=5 // pred_region
        // Predicated region
        $region25: #{tpu_custom_call.1} parent=23 // pred_check
          %p237 = pneg %p104
        $region26: #{tpu_custom_call.1} parent=23 // pred_check_branch
          %239 = sbr.rel (%p237) target = $region28
        $region27: #{tpu_custom_call.1} parent=23 // pred_region
          %s240 = sand.u32 %s16, 1
          %s241 = scalar_lea.sflag [#allocation5], %s240
          %s242 = sand.u32 %s94, 1
          %s243 = smul.addr %s242, 128
          %s244 = scalar_lea.vmem [#allocation9], %s243
          %p245 = scmp.lt.s32.totalorder %s24, 1
          %s246 = scalar_select %p245, %s24, 1
          %s247 = smul.u32 16, %s246
          %s249 = ssub.s32 2048, 2048
          %250 = vsyncadd %s241, %s249
          %s251 = smul.addr %s247, 128
          %s252 = scalar_lea.hbm %s2, %s251
          %s253 = sshll.u32 %s244, 4
          %s254 = int_to_ptr.vmem [resolvable:$true] %s253
          %259 = dma.hbm_to_vmem [thread:$0]  %s252, 2048, %s254, %s241, 128, 128, 8
        $region28: #{tpu_custom_call.1} parent=23 // pred_fallthru
          _
        // Predicated region
        $region29: #{tpu_custom_call.1} parent=23 // pred_check
          %p260 = pneg %p134
        $region30: #{tpu_custom_call.1} parent=23 // pred_check_branch
          %262 = sbr.rel (%p260) target = $region32
        $region31: #{tpu_custom_call.1} parent=23 // pred_region
          %s263 = sand.u32 %s16, 1
          %s264 = scalar_lea.sflag [#allocation5], %s263
          %s265 = sand.u32 %s124, 1
          %s266 = smul.addr %s265, 128
          %s267 = scalar_lea.vmem [#allocation10], %s266
          %p268 = scmp.lt.s32.totalorder %s24, 0
          %s269 = scalar_select %p268, %s24, 0
          %s270 = smul.u32 16, %s269
          %s272 = ssub.s32 2048, 2048
          %273 = vsyncadd %s264, %s272
          %s274 = smul.addr %s270, 128
          %s275 = scalar_lea.hbm %s3, %s274
          %s276 = sshll.u32 %s267, 4
          %s277 = int_to_ptr.vmem [resolvable:$true] %s276
          %282 = dma.hbm_to_vmem [thread:$0]  %s275, 2048, %s277, %s264, 128, 128, 8
        $region32: #{tpu_custom_call.1} parent=23 // pred_fallthru
          _
      $region24: #{tpu_custom_call.1} parent=5 // pred_fallthru
        _
      %p283 = scmp.le.s32.totalorder 1, %s16
      %p284 = scmp.lt.s32.totalorder %s16, 3
      %p285 = pnand %p283, %p284
      %p286 = pneg %p285
      // Predicated region
      $region33: #{tpu_custom_call.1} parent=5 // pred_check
        _
      $region34: #{tpu_custom_call.1} parent=5 // pred_check_branch
        %288 = sbr.rel (%p285) target = $region36
      $region35: #{tpu_custom_call.1} parent=5 // pred_region
        %s289 = ssub.s32 %s16, 1
        // Predicated region
        $region37: #{tpu_custom_call.1} parent=35 // pred_check
          %p290 = pneg %p54
        $region38: #{tpu_custom_call.1} parent=35 // pred_check_branch
          %292 = sbr.rel (%p290) target = $region40
        $region39: #{tpu_custom_call.1} parent=35 // pred_region
          %293 = dma.done [#allocation5], 128
        $region40: #{tpu_custom_call.1} parent=35 // pred_fallthru
          _
        // Predicated region
        $region41: #{tpu_custom_call.1} parent=35 // pred_check
          %p294 = pneg %p80
        $region42: #{tpu_custom_call.1} parent=35 // pred_check_branch
          %296 = sbr.rel (%p294) target = $region44
        $region43: #{tpu_custom_call.1} parent=35 // pred_region
          %297 = dma.done [#allocation8], 128
        $region44: #{tpu_custom_call.1} parent=35 // pred_fallthru
          _
        %s298 = sand.u32 %s21, 1
        %s299 = scalar_lea.sflag [#allocation5], %s298
        %s300 = sand.u32 %s97, 1
        %s301 = smul.addr %s300, 128
        %s302 = scalar_lea.vmem [#allocation9], %s301
        // Predicated region
        $region45: #{tpu_custom_call.1} parent=35 // pred_check
          %p303 = pneg %p110
        $region46: #{tpu_custom_call.1} parent=35 // pred_check_branch
          %305 = sbr.rel (%p303) target = $region48
        $region47: #{tpu_custom_call.1} parent=35 // pred_region
          %306 = dma.done %s299, 2048
        $region48: #{tpu_custom_call.1} parent=35 // pred_fallthru
          _
        %s307 = sand.u32 %s21, 1
        %s308 = scalar_lea.sflag [#allocation5], %s307
        %s309 = sand.u32 %s127, 1
        %s310 = smul.addr %s309, 128
        %s311 = scalar_lea.vmem [#allocation10], %s310
        // Predicated region
        $region49: #{tpu_custom_call.1} parent=35 // pred_check
          %p312 = pneg %p140
        $region50: #{tpu_custom_call.1} parent=35 // pred_check_branch
          %314 = sbr.rel (%p312) target = $region52
        $region51: #{tpu_custom_call.1} parent=35 // pred_region
          %315 = dma.done %s308, 2048
        $region52: #{tpu_custom_call.1} parent=35 // pred_fallthru
          _
        %p316 = pneg %p54
        %p317 = pneg %p51
        %p318 = pneg %p80
        %p319 = pneg %p77
        %s320 = sand.u32 %s21, 1
        %s321 = scalar_lea.sflag [#allocation5], %s320
        %s322 = sand.u32 %s97, 1
        %s323 = smul.addr %s322, 128
        %s324 = scalar_lea.vmem [#allocation9], %s323
        %p325 = pneg %p110
        %p326 = pneg %p107
        %s327 = sand.u32 %s21, 1
        %s328 = scalar_lea.sflag [#allocation5], %s327
        %s329 = sand.u32 %s127, 1
        %s330 = smul.addr %s329, 128
        %s331 = scalar_lea.vmem [#allocation10], %s330
        %p332 = pneg %p140
        %p333 = pneg %p137
        %p334 = pneg %p166
        %p335 = pneg %p163
        %p336 = pneg %p192
        %p337 = pneg %p189
        %p338 = scmp.lt.s32.totalorder %s26, 1
        %s339 = scalar_select %p338, %s26, 1
        %s340 = smul.u32 16, %s339
        %p341 = scmp.lt.s32.totalorder %s26, 0
        %s342 = scalar_select %p341, %s26, 0
        %s343 = smul.u32 16, %s342
        %p344 = scmp.eq.s32.totalorder %s26, 0
        // Predicated region
        $region53: #{tpu_custom_call.1} parent=35 // pred_check
          %p345 = pneg %p344
        $region54: #{tpu_custom_call.1} parent=35 // pred_check_branch
          %347 = sbr.rel (%p345) target = $region56
        $region55: #{tpu_custom_call.1} parent=35 // pred_region
          %348 = vst [vmem:[#allocation2] sm:$0xff] 0.0
          %349 = vst [vmem:[#allocation3] sm:$0xff] 0.0
        $region56: #{tpu_custom_call.1} parent=35 // pred_fallthru
          _
        %v350 = vld [vmem:[#allocation4] sm:$0xff]
        %v351 = vld [vmem:[#allocation7] sm:$0xff]
        %s352 = smul.u32 %s26, 128
        %v353 = vlaneseq
        %v354 = vand.u32 %v353, 127
        %v355 = vstv %s352
        %v356 = vadd.s32 %v354, %v355
        %357 = vset.pattern.permute.xlu0 0
        %358 = vperm.xlu0 %357, %v350
        %v359 = vpop.permute.xlu0 %358
        %vm360 = vcmp.eq.s32.totalorder %v359, %v356
        %v361 = vsel %vm360, 1, 0
        %v362 = vcvt.s32.f32 %v361
        %v363 = vadd.f32 %v362, 0.0
        %364 = vset.pattern.permute.xlu0 0
        %365 = vperm.xlu0 %364, %v351
        %v366 = vpop.permute.xlu0 %365
        %vm367 = vcmp.eq.s32.totalorder %v366, %v356
        %v368 = vsel %vm367, 1, 0
        %v369 = vcvt.s32.f32 %v368
        %v370 = vadd.f32 %v369, 0.0
        %371 = vset.pattern.permute.xlu0 1
        %372 = vperm.xlu0 %371, %v350
        %v373 = vpop.permute.xlu0 %372
        %vm374 = vcmp.eq.s32.totalorder %v373, %v356
        %v375 = vsel %vm374, 1, 0
        %v376 = vcvt.s32.f32 %v375
        %v377 = vadd.f32 %v363, %v376
        %378 = vset.pattern.permute.xlu0 1
        %379 = vperm.xlu0 %378, %v351
        %v380 = vpop.permute.xlu0 %379
        %vm381 = vcmp.eq.s32.totalorder %v380, %v356
        %v382 = vsel %vm381, 1, 0
        %v383 = vcvt.s32.f32 %v382
        %v384 = vadd.f32 %v370, %v383
        %385 = vset.pattern.permute.xlu0 2
        %386 = vperm.xlu0 %385, %v350
        %v387 = vpop.permute.xlu0 %386
        %vm388 = vcmp.eq.s32.totalorder %v387, %v356
        %v389 = vsel %vm388, 1, 0
        %v390 = vcvt.s32.f32 %v389
        %v391 = vadd.f32 %v377, %v390
        %392 = vset.pattern.permute.xlu0 2
        %393 = vperm.xlu0 %392, %v351
        %v394 = vpop.permute.xlu0 %393
        %vm395 = vcmp.eq.s32.totalorder %v394, %v356
        %v396 = vsel %vm395, 1, 0
        %v397 = vcvt.s32.f32 %v396
        %v398 = vadd.f32 %v384, %v397
        %399 = vset.pattern.permute.xlu0 3
        %400 = vperm.xlu0 %399, %v350
        %v401 = vpop.permute.xlu0 %400
        %vm402 = vcmp.eq.s32.totalorder %v401, %v356
        %v403 = vsel %vm402, 1, 0
        %v404 = vcvt.s32.f32 %v403
        %v405 = vadd.f32 %v391, %v404
        %406 = vset.pattern.permute.xlu0 3
        %407 = vperm.xlu0 %406, %v351
        %v408 = vpop.permute.xlu0 %407
        %vm409 = vcmp.eq.s32.totalorder %v408, %v356
        %v410 = vsel %vm409, 1, 0
        %v411 = vcvt.s32.f32 %v410
        %v412 = vadd.f32 %v398, %v411
        %413 = vset.pattern.permute.xlu0 4
        %414 = vperm.xlu0 %413, %v350
        %v415 = vpop.permute.xlu0 %414
        %vm416 = vcmp.eq.s32.totalorder %v415, %v356
        %v417 = vsel %vm416, 1, 0
        %v418 = vcvt.s32.f32 %v417
        %v419 = vadd.f32 %v405, %v418
        %420 = vset.pattern.permute.xlu0 4
        %421 = vperm.xlu0 %420, %v351
        %v422 = vpop.permute.xlu0 %421
        %vm423 = vcmp.eq.s32.totalorder %v422, %v356
        %v424 = vsel %vm423, 1, 0
        %v425 = vcvt.s32.f32 %v424
        %v426 = vadd.f32 %v412, %v425
        %427 = vset.pattern.permute.xlu0 5
        %428 = vperm.xlu0 %427, %v350
        %v429 = vpop.permute.xlu0 %428
        %vm430 = vcmp.eq.s32.totalorder %v429, %v356
        %v431 = vsel %vm430, 1, 0
        %v432 = vcvt.s32.f32 %v431
        %v433 = vadd.f32 %v419, %v432
        %434 = vset.pattern.permute.xlu0 5
        %435 = vperm.xlu0 %434, %v351
        %v436 = vpop.permute.xlu0 %435
        %vm437 = vcmp.eq.s32.totalorder %v436, %v356
        %v438 = vsel %vm437, 1, 0
        %v439 = vcvt.s32.f32 %v438
        %v440 = vadd.f32 %v426, %v439
        %441 = vset.pattern.permute.xlu0 6
        %442 = vperm.xlu0 %441, %v350
        %v443 = vpop.permute.xlu0 %442
        %vm444 = vcmp.eq.s32.totalorder %v443, %v356
        %v445 = vsel %vm444, 1, 0
        %v446 = vcvt.s32.f32 %v445
        %v447 = vadd.f32 %v433, %v446
        %448 = vset.pattern.permute.xlu0 6
        %449 = vperm.xlu0 %448, %v351
        %v450 = vpop.permute.xlu0 %449
        %vm451 = vcmp.eq.s32.totalorder %v450, %v356
        %v452 = vsel %vm451, 1, 0
        %v453 = vcvt.s32.f32 %v452
        %v454 = vadd.f32 %v440, %v453
        %455 = vset.pattern.permute.xlu0 7
        %456 = vperm.xlu0 %455, %v350
        %v457 = vpop.permute.xlu0 %456
        %vm458 = vcmp.eq.s32.totalorder %v457, %v356
        %v459 = vsel %vm458, 1, 0
        %v460 = vcvt.s32.f32 %v459
        %v461 = vadd.f32 %v447, %v460
        %462 = vset.pattern.permute.xlu0 7
        %463 = vperm.xlu0 %462, %v351
        %v464 = vpop.permute.xlu0 %463
        %vm465 = vcmp.eq.s32.totalorder %v464, %v356
        %v466 = vsel %vm465, 1, 0
        %v467 = vcvt.s32.f32 %v466
        %v468 = vadd.f32 %v454, %v467
        %v469 = vld [vmem:[#allocation2] sm:$0xff]
        %v470 = vld [vmem:[%s311] sm:$0xff]
        %v471 = vld [vmem:[%s311 + $0x8] sm:$0xff]
        %v472 = vld [vmem:[%s311 + $0x10] sm:$0xff]
        %v473 = vld [vmem:[%s311 + $0x18] sm:$0xff]
        %v474 = vld [vmem:[%s311 + $0x20] sm:$0xff]
        %v475 = vld [vmem:[%s311 + $0x28] sm:$0xff]
        %v476 = vld [vmem:[%s311 + $0x30] sm:$0xff]
        %v477 = vld [vmem:[%s311 + $0x38] sm:$0xff]
        %v478 = vld [vmem:[%s311 + $0x40] sm:$0xff]
        %v479 = vld [vmem:[%s311 + $0x48] sm:$0xff]
        %v480 = vld [vmem:[%s311 + $0x50] sm:$0xff]
        %v481 = vld [vmem:[%s311 + $0x58] sm:$0xff]
        %v482 = vld [vmem:[%s311 + $0x60] sm:$0xff]
        %v483 = vld [vmem:[%s311 + $0x68] sm:$0xff]
        %v484 = vld [vmem:[%s311 + $0x70] sm:$0xff]
        %v485 = vld [vmem:[%s311 + $0x78] sm:$0xff]
        %486 = vmatprep.subr.mxu0 0.0
        %487 = vmatpush1.msra.mxu0 %v485
        %488 = vmatprep.subr.mxu0 0.0
        %489 = vmatpush1.msra.mxu0 %v484
        %490 = vmatprep.subr.mxu0 0.0
        %491 = vmatpush1.msra.mxu0 %v483
        %492 = vmatprep.subr.mxu0 0.0
        %493 = vmatpush1.msra.mxu0 %v482
        %494 = vmatprep.subr.mxu0 0.0
        %495 = vmatpush1.msra.mxu0 %v481
        %496 = vmatprep.subr.mxu0 0.0
        %497 = vmatpush1.msra.mxu0 %v480
        %498 = vmatprep.subr.mxu0 0.0
        %499 = vmatpush1.msra.mxu0 %v479
        %500 = vmatprep.subr.mxu0 0.0
        %501 = vmatpush1.msra.mxu0 %v478
        %502 = vmatprep.subr.mxu0 0.0
        %503 = vmatpush1.msra.mxu0 %v477
        %504 = vmatprep.subr.mxu0 0.0
        %505 = vmatpush1.msra.mxu0 %v476
        %506 = vmatprep.subr.mxu0 0.0
        %507 = vmatpush1.msra.mxu0 %v475
        %508 = vmatprep.subr.mxu0 0.0
        %509 = vmatpush1.msra.mxu0 %v474
        %510 = vmatprep.subr.mxu0 0.0
        %511 = vmatpush1.msra.mxu0 %v473
        %512 = vmatprep.subr.mxu0 0.0
        %513 = vmatpush1.msra.mxu0 %v472
        %514 = vmatprep.subr.mxu0 0.0
        %515 = vmatpush1.msra.mxu0 %v471
        %516 = vmatprep.subr.mxu0 0.0
        %517 = vmatpush1.msra.mxu0 %v470
        %518 = vmatprep.subr.mxu0 0.0
        %519 = vmatpush2.msra.mxu0 0.0
        %520 = vmatprep.subr.mxu0 0.0
        %521 = vmatpush2.msra.mxu0 0.0
        %522 = vmatprep.subr.mxu0 0.0
        %523 = vmatpush2.msra.mxu0 0.0
        %524 = vmatprep.subr.mxu0 0.0
        %525 = vmatpush2.msra.mxu0 0.0
        %526 = vmatprep.subr.mxu0 0.0
        %527 = vmatpush2.msra.mxu0 0.0
        %528 = vmatprep.subr.mxu0 0.0
        %529 = vmatpush2.msra.mxu0 0.0
        %530 = vmatprep.subr.mxu0 0.0
        %531 = vmatpush2.msra.mxu0 0.0
        %532 = vmatprep.subr.mxu0 0.0
        %533 = vmatpush2.msra.mxu0 0.0
        %534 = vmatprep.subr.mxu0 0.0
        %535 = vmatpush2.msra.mxu0 0.0
        %536 = vmatprep.subr.mxu0 0.0
        %537 = vmatpush2.msra.mxu0 0.0
        %538 = vmatprep.subr.mxu0 0.0
        %539 = vmatpush2.msra.mxu0 0.0
        %540 = vmatprep.subr.mxu0 0.0
        %541 = vmatpush2.msra.mxu0 0.0
        %542 = vmatprep.subr.mxu0 0.0
        %543 = vmatpush2.msra.mxu0 0.0
        %544 = vmatprep.subr.mxu0 0.0
        %545 = vmatpush2.msra.mxu0 0.0
        %546 = vmatprep.subr.mxu0 0.0
        %547 = vmatpush2.msra.mxu0 0.0
        %548 = vmatprep.subr.mxu0 0.0
        %549 = vmatpush2.msra.mxu0 0.0
        %550 = vmatprep.mubr.f32.mxu0 0.0
        %551 = vmatmul.mubr.f32.gmra.mxu0 %v468
        %v552 = vpop.f32.mrf.mxu0
        %v553 = vadd.f32 0.0, %v552
        %v554 = vpop.f32.mrf.mxu0
        %555 = vdwg.mxu0
        %v556 = vadd.f32 %v469, %v553
        %557 = vst [vmem:[#allocation2] sm:$0xff] %v556
        %v558 = vld [vmem:[#allocation3] sm:$0xff]
        %v559 = vld [vmem:[%s302] sm:$0xff]
        %v560 = vld [vmem:[%s302 + $0x8] sm:$0xff]
        %v561 = vld [vmem:[%s302 + $0x10] sm:$0xff]
        %v562 = vld [vmem:[%s302 + $0x18] sm:$0xff]
        %v563 = vld [vmem:[%s302 + $0x20] sm:$0xff]
        %v564 = vld [vmem:[%s302 + $0x28] sm:$0xff]
        %v565 = vld [vmem:[%s302 + $0x30] sm:$0xff]
        %v566 = vld [vmem:[%s302 + $0x38] sm:$0xff]
        %v567 = vld [vmem:[%s302 + $0x40] sm:$0xff]
        %v568 = vld [vmem:[%s302 + $0x48] sm:$0xff]
        %v569 = vld [vmem:[%s302 + $0x50] sm:$0xff]
        %v570 = vld [vmem:[%s302 + $0x58] sm:$0xff]
        %v571 = vld [vmem:[%s302 + $0x60] sm:$0xff]
        %v572 = vld [vmem:[%s302 + $0x68] sm:$0xff]
        %v573 = vld [vmem:[%s302 + $0x70] sm:$0xff]
        %v574 = vld [vmem:[%s302 + $0x78] sm:$0xff]
        %575 = vmatprep.subr.mxu0 0.0
        %576 = vmatpush1.msra.mxu0 %v574
        %577 = vmatprep.subr.mxu0 0.0
        %578 = vmatpush1.msra.mxu0 %v573
        %579 = vmatprep.subr.mxu0 0.0
        %580 = vmatpush1.msra.mxu0 %v572
        %581 = vmatprep.subr.mxu0 0.0
        %582 = vmatpush1.msra.mxu0 %v571
        %583 = vmatprep.subr.mxu0 0.0
        %584 = vmatpush1.msra.mxu0 %v570
        %585 = vmatprep.subr.mxu0 0.0
        %586 = vmatpush1.msra.mxu0 %v569
        %587 = vmatprep.subr.mxu0 0.0
        %588 = vmatpush1.msra.mxu0 %v568
        %589 = vmatprep.subr.mxu0 0.0
        %590 = vmatpush1.msra.mxu0 %v567
        %591 = vmatprep.subr.mxu0 0.0
        %592 = vmatpush1.msra.mxu0 %v566
        %593 = vmatprep.subr.mxu0 0.0
        %594 = vmatpush1.msra.mxu0 %v565
        %595 = vmatprep.subr.mxu0 0.0
        %596 = vmatpush1.msra.mxu0 %v564
        %597 = vmatprep.subr.mxu0 0.0
        %598 = vmatpush1.msra.mxu0 %v563
        %599 = vmatprep.subr.mxu0 0.0
        %600 = vmatpush1.msra.mxu0 %v562
        %601 = vmatprep.subr.mxu0 0.0
        %602 = vmatpush1.msra.mxu0 %v561
        %603 = vmatprep.subr.mxu0 0.0
        %604 = vmatpush1.msra.mxu0 %v560
        %605 = vmatprep.subr.mxu0 0.0
        %606 = vmatpush1.msra.mxu0 %v559
        %607 = vmatprep.subr.mxu0 0.0
        %608 = vmatpush2.msra.mxu0 0.0
        %609 = vmatprep.subr.mxu0 0.0
        %610 = vmatpush2.msra.mxu0 0.0
        %611 = vmatprep.subr.mxu0 0.0
        %612 = vmatpush2.msra.mxu0 0.0
        %613 = vmatprep.subr.mxu0 0.0
        %614 = vmatpush2.msra.mxu0 0.0
        %615 = vmatprep.subr.mxu0 0.0
        %616 = vmatpush2.msra.mxu0 0.0
        %617 = vmatprep.subr.mxu0 0.0
        %618 = vmatpush2.msra.mxu0 0.0
        %619 = vmatprep.subr.mxu0 0.0
        %620 = vmatpush2.msra.mxu0 0.0
        %621 = vmatprep.subr.mxu0 0.0
        %622 = vmatpush2.msra.mxu0 0.0
        %623 = vmatprep.subr.mxu0 0.0
        %624 = vmatpush2.msra.mxu0 0.0
        %625 = vmatprep.subr.mxu0 0.0
        %626 = vmatpush2.msra.mxu0 0.0
        %627 = vmatprep.subr.mxu0 0.0
        %628 = vmatpush2.msra.mxu0 0.0
        %629 = vmatprep.subr.mxu0 0.0
        %630 = vmatpush2.msra.mxu0 0.0
        %631 = vmatprep.subr.mxu0 0.0
        %632 = vmatpush2.msra.mxu0 0.0
        %633 = vmatprep.subr.mxu0 0.0
        %634 = vmatpush2.msra.mxu0 0.0
        %635 = vmatprep.subr.mxu0 0.0
        %636 = vmatpush2.msra.mxu0 0.0
        %637 = vmatprep.subr.mxu0 0.0
        %638 = vmatpush2.msra.mxu0 0.0
        %639 = vmatprep.mubr.f32.mxu0 0.0
        %640 = vmatmul.mubr.f32.gmra.mxu0 %v461
        %v641 = vpop.f32.mrf.mxu0
        %v642 = vadd.f32 0.0, %v641
        %v643 = vpop.f32.mrf.mxu0
        %644 = vdwg.mxu0
        %v645 = vadd.f32 %v558, %v642
        %646 = vst [vmem:[#allocation3] sm:$0xff] %v645
        %p647 = scmp.eq.s32.totalorder %s26, 1
        // Predicated region
        $region57: #{tpu_custom_call.1} parent=35 // pred_check
          %p648 = pneg %p647
        $region58: #{tpu_custom_call.1} parent=35 // pred_check_branch
          %650 = sbr.rel (%p648) target = $region60
        $region59: #{tpu_custom_call.1} parent=35 // pred_region
          %v651 = vld [vmem:[#allocation2] sm:$0xff]
          %652 = vst [vmem:[#allocation11] sm:$0xff] %v651
          %v653 = vld [vmem:[#allocation3] sm:$0xff]
          %654 = vst [vmem:[#allocation12] sm:$0xff] %v653
        $region60: #{tpu_custom_call.1} parent=35 // pred_fallthru
          _
        // Predicated region
        $region61: #{tpu_custom_call.1} parent=35 // pred_check
          %p655 = pneg %p163
        $region62: #{tpu_custom_call.1} parent=35 // pred_check_branch
          %657 = sbr.rel (%p655) target = $region64
        $region63: #{tpu_custom_call.1} parent=35 // pred_region
          %s659 = ssub.s32 128, 128
          %660 = vsyncadd [#allocation6], %s659
          %s661 = smul.addr %s25, 128
          %s662 = scalar_lea.hbm %s4, %s661
          %s664 = sshll.u32 [#allocation11], 4
          %s665 = int_to_ptr.vmem [resolvable:$true] %s664
          %667 = dma.vmem_to_hbm [thread:$0]  %s665, 128, %s662, [#allocation6]
        $region64: #{tpu_custom_call.1} parent=35 // pred_fallthru
          _
        // Predicated region
        $region65: #{tpu_custom_call.1} parent=35 // pred_check
          %p668 = pneg %p189
        $region66: #{tpu_custom_call.1} parent=35 // pred_check_branch
          %670 = sbr.rel (%p668) target = $region68
        $region67: #{tpu_custom_call.1} parent=35 // pred_region
          %s672 = ssub.s32 128, 128
          %673 = vsyncadd [#allocation13], %s672
          %s674 = smul.addr %s25, 128
          %s675 = scalar_lea.hbm %s5, %s674
          %s677 = sshll.u32 [#allocation12], 4
          %s678 = int_to_ptr.vmem [resolvable:$true] %s677
          %680 = dma.vmem_to_hbm [thread:$0]  %s678, 128, %s675, [#allocation13]
        $region68: #{tpu_custom_call.1} parent=35 // pred_fallthru
          _
        // Predicated region
        $region69: #{tpu_custom_call.1} parent=35 // pred_check
          %p681 = pneg %p163
        $region70: #{tpu_custom_call.1} parent=35 // pred_check_branch
          %683 = sbr.rel (%p681) target = $region72
        $region71: #{tpu_custom_call.1} parent=35 // pred_region
          %684 = dma.done [#allocation6], 128
        $region72: #{tpu_custom_call.1} parent=35 // pred_fallthru
          _
        // Predicated region
        $region73: #{tpu_custom_call.1} parent=35 // pred_check
          %p685 = pneg %p189
        $region74: #{tpu_custom_call.1} parent=35 // pred_check_branch
          %687 = sbr.rel (%p685) target = $region76
        $region75: #{tpu_custom_call.1} parent=35 // pred_region
          %688 = dma.done [#allocation13], 128
        $region76: #{tpu_custom_call.1} parent=35 // pred_fallthru
          _
      $region36: #{tpu_custom_call.1} parent=5 // pred_fallthru
        _
      %p689 = scmp.le.s32.totalorder 2, %s16
      // Predicated region
      $region77: #{tpu_custom_call.1} parent=5 // pred_check
        %p690 = pneg %p689
      $region78: #{tpu_custom_call.1} parent=5 // pred_check_branch
        %692 = sbr.rel (%p690) target = $region80
      $region79: #{tpu_custom_call.1} parent=5 // pred_region
        %s693 = ssub.s32 %s16, 2
      $region80: #{tpu_custom_call.1} parent=5 // pred_fallthru
        _
    $region6: #{tpu_custom_call.1} parent=1 // loop_footer
      %s20 = sadd.s32 1, %s16
    $region7: #{tpu_custom_call.1} parent=1 // loop_footer_branch
      %15 = sbr.rel target = $region3
    $region8: #{tpu_custom_call.1} parent=1 // loop_exit
      _
    %694 = vsyncpa [#allocation5], 1
    %s695 = scalar_lea.sflag [#allocation5], 1
    %696 = vsyncpa %s695, 1
    %697 = vsyncpa [#allocation8], 1
    %698 = vsyncpa [#allocation6], 1
    %s699 = scalar_lea.sflag [#allocation6], 1
    %700 = vsyncpa %s699, 1
    %701 = vsyncpa [#allocation13], 1

</llo_original>
